<compile_context>
chip_gen: v7x
topology: tpu7x:2x2x1
jax: 0.10.0
libtpu: 0.0.40
codegen_flags: <defaults>
</compile_context>

<pallas_src>
import jax
import jax.numpy as jnp
from jax.experimental import pallas as pl
from jax.experimental.pallas import tpu as pltpu


def _round_up(x: int, m: int) -> int:
    return (x + m - 1) // m * m


def _make_fused_kernel(num_layers: int, dropout_p: float, training: bool,
                       use_bf16_matmul: bool):
    apply_dropout = training and dropout_p > 0.0
    num_drop = (num_layers - 1) if apply_dropout else 0
    keep_scale = 1.0 / (1.0 - dropout_p) if dropout_p < 1.0 else 0.0
    # drop iff bits < threshold  =>  P(drop) = dropout_p
    threshold = min(int(round(dropout_p * (2.0 ** 32))), 2 ** 32 - 1)

    def kernel(*refs):
        # refs = x, (w0, b0), ..., (w_{L-1}, b_{L-1}), [mask_0..mask_{L-2}], out
        x_ref = refs[0]
        wb_refs = refs[1:1 + 2 * num_layers]
        mask_refs = refs[1 + 2 * num_layers:1 + 2 * num_layers + num_drop]
        o_ref = refs[-1]

        y = x_ref[...].astype(jnp.float32)
        for i in range(num_layers):
            w = wb_refs[2 * i][...]
            b = wb_refs[2 * i + 1][...].astype(jnp.float32)
            if use_bf16_matmul:
                lhs = y.astype(jnp.bfloat16)
                rhs = w.astype(jnp.bfloat16)
            else:
                lhs = y
                rhs = w.astype(jnp.float32)
            y = jnp.dot(lhs, rhs, preferred_element_type=jnp.float32) + b
            if i < num_layers - 1:
                y = jnp.maximum(y, 0.0)
                if apply_dropout:
                    bits = mask_refs[i][...]
                    keep = bits >= jnp.uint32(threshold)
                    y = jnp.where(keep, y * jnp.float32(keep_scale),
                                  jnp.float32(0.0))
        o_ref[...] = y.astype(o_ref.dtype)

    return kernel


def mlp_drop_forward(x, params, *, dropout_p=0.1, training=False,
                     rng_key=None, row_tile=512, use_bf16_matmul=False):
    """Fused MLPDrop forward.

    params: list of (W_t, b) with W_t shape (in, out) — PyTorch weight
    transposed — so the kernel computes y = x @ W_t + b.
    """
    lead = x.shape[:-1]
    in_dim = x.shape[-1]
    x2d = x.reshape(-1, in_dim)
    rows = x2d.shape[0]
    num_layers = len(params)
    out_dim = params[-1][0].shape[1]

    # ---- rows tiling (sublane multiple of 8, up to row_tile) -------------
    tile = _round_up(min(row_tile, max(8, _round_up(rows, 8))), 8)
    padded_rows = _round_up(rows, tile)
    if padded_rows != rows:
        x2d = jnp.pad(x2d, ((0, padded_rows - rows), (0, 0)))
    n_tiles = padded_rows // tile

    # ---- lane-dense output: pad last layer's out features to mult of 128 -
    out_pad = _round_up(out_dim, 128)
    padded_params = []
    for i, (w, b) in enumerate(params):
        if i == num_layers - 1 and out_pad != out_dim:
            w = jnp.pad(w, ((0, 0), (0, out_pad - out_dim)))
            b = jnp.pad(b, (0, out_pad - out_dim))
        padded_params.append((w, b.reshape(1, -1)))

    # ---- dropout random bits (per-tile unique by construction) -----------
    apply_dropout = training and dropout_p > 0.0
    masks = []
    if apply_dropout:
        if rng_key is None:
            rng_key = jax.random.PRNGKey(0)
        keys = jax.random.split(rng_key, num_layers - 1)
        for i in range(num_layers - 1):
            h = params[i][0].shape[1]
            masks.append(jax.random.bits(keys[i], (padded_rows, h),
                                         dtype=jnp.uint32))

    kernel = _make_fused_kernel(num_layers, dropout_p, training,
                                use_bf16_matmul)

    in_specs = [pl.BlockSpec((tile, in_dim), lambda i: (i, 0))]
    inputs = [x2d]
    for (w, b) in padded_params:
        in_specs.append(pl.BlockSpec(w.shape, lambda i: (0, 0)))  # resident
        in_specs.append(pl.BlockSpec(b.shape, lambda i: (0, 0)))  # resident
        inputs += [w, b]
    for m in masks:
        in_specs.append(pl.BlockSpec((tile, m.shape[1]), lambda i: (i, 0)))
        inputs.append(m)

    out = pl.pallas_call(
        kernel,
        out_shape=jax.ShapeDtypeStruct((padded_rows, out_pad), x.dtype),
        grid=(n_tiles,),
        in_specs=in_specs,
        out_specs=pl.BlockSpec((tile, out_pad), lambda i: (i, 0)),
        compiler_params=pltpu.CompilerParams(
            dimension_semantics=("parallel",)),
    )(*inputs)

    out = out[:rows, :out_dim]
    return out.reshape(*lead, out_dim)


def init_mlp_params(key, input_dim, hidden_dim, output_dim, num_layers,
                    dtype=jnp.float32):
    """Deterministic init mimicking nn.Linear default U(-1/sqrt(fan_in), ...)."""
    h = [hidden_dim] * (num_layers - 1)
    dims = list(zip([input_dim] + h, h + [output_dim]))
    params = []
    for (n_in, n_out) in dims:
        key, kw, kb = jax.random.split(key, 3)
        bound = 1.0 / (n_in ** 0.5)
        # PyTorch stores weight as (out, in); we store its transpose (in, out).
        w_t = jax.random.uniform(kw, (n_in, n_out), dtype, -bound, bound)
        b = jax.random.uniform(kb, (n_out,), dtype, -bound, bound)
        params.append((w_t, b))
    return params


def mlp_drop_reference(x, params):
    """Plain-JAX reference (eval mode: dropout = identity)."""
    num_layers = len(params)
    for i, (w, b) in enumerate(params):
        x = x @ w + b
        if i < num_layers - 1:
            x = jnp.maximum(x, 0.0)
    return x


if __name__ == "__main__":
    # Module config: MLPDrop(input_dim=32, hidden_dim=32, output_dim=16,
    #                        num_layers=3, dropout=0.1)
    input_dim, hidden_dim, output_dim, num_layers = 32, 32, 16, 3
    dropout_p = 0.1

    key = jax.random.PRNGKey(0)
    kx, kp, kd = jax.random.split(key, 3)
    x = jax.random.normal(kx, (2, 8, input_dim), jnp.float32)  # (B=2, S=8, 32)
    params = init_mlp_params(kp, input_dim, hidden_dim, output_dim, num_layers)

    # Eval mode (dropout is identity) — compare against plain-JAX reference.
    out = mlp_drop_forward(x, params, dropout_p=dropout_p, training=False)
    out = jax.block_until_ready(out)
    ref = mlp_drop_reference(x, params)
    assert out.shape == (2, 8, output_dim), out.shape
    assert jnp.allclose(out, ref, atol=1e-2, rtol=1e-2), \
        float(jnp.max(jnp.abs(out - ref)))

    # Eval mode with bf16 MXU inputs (f32 accumulation) — looser tolerance.
    out_bf16 = mlp_drop_forward(x, params, dropout_p=dropout_p,
                                training=False, use_bf16_matmul=True)
    out_bf16 = jax.block_until_ready(out_bf16)
    assert jnp.allclose(out_bf16, ref, atol=5e-2, rtol=5e-2), \
        float(jnp.max(jnp.abs(out_bf16 - ref)))

    # Training mode — exercises the dropout path (host-generated uint32 bits,
    # threshold compare + inverted scaling inside the kernel).
    out_train = mlp_drop_forward(x, params, dropout_p=dropout_p,
                                 training=True, rng_key=kd)
    out_train = jax.block_until_ready(out_train)
    assert out_train.shape == (2, 8, output_dim)
    assert bool(jnp.all(jnp.isfinite(out_train)))

    print("KERNEL_OK")
</pallas_src>

<mosaic_0001>
module attributes {stable_mosaic.version = 11 : i64} {
  func.func @kernel(%arg0: i32, %arg1: memref<16x32xf32, #tpu.memory_space<vmem>>, %arg2: memref<32x32xf32, #tpu.memory_space<vmem>>, %arg3: memref<1x32xf32, #tpu.memory_space<vmem>>, %arg4: memref<32x32xf32, #tpu.memory_space<vmem>>, %arg5: memref<1x32xf32, #tpu.memory_space<vmem>>, %arg6: memref<32x128xf32, #tpu.memory_space<vmem>>, %arg7: memref<1x128xf32, #tpu.memory_space<vmem>>, %arg8: memref<16x128xf32, #tpu.memory_space<vmem>>) attributes {dimension_semantics = [#tpu.dimension_semantics<parallel>], iteration_bounds = array<i64: 1>, scalar_prefetch = 0 : i64, scratch_operands = 0 : i64, tpu.core_type = #tpu.core_type<tc>, window_params = [{transform_indices = @transform_0, window_bounds = array<i64: 16, 32>}, {pipeline_mode = #tpu.pipeline_mode<synchronous>, transform_indices = @transform_1, window_bounds = array<i64: 32, 32>}, {pipeline_mode = #tpu.pipeline_mode<synchronous>, transform_indices = @transform_2, window_bounds = array<i64: 1, 32>}, {pipeline_mode = #tpu.pipeline_mode<synchronous>, transform_indices = @transform_3, window_bounds = array<i64: 32, 32>}, {pipeline_mode = #tpu.pipeline_mode<synchronous>, transform_indices = @transform_4, window_bounds = array<i64: 1, 32>}, {pipeline_mode = #tpu.pipeline_mode<synchronous>, transform_indices = @transform_5, window_bounds = array<i64: 32, 128>}, {pipeline_mode = #tpu.pipeline_mode<synchronous>, transform_indices = @transform_6, window_bounds = array<i64: 1, 128>}, {transform_indices = @transform_7, window_bounds = array<i64: 16, 128>}]} {
    %c0 = arith.constant 0 : index
    %c0_0 = arith.constant 0 : index
    %0 = vector.load %arg1[%c0, %c0_0] : memref<16x32xf32, #tpu.memory_space<vmem>>, vector<16x32xf32>
    %c0_1 = arith.constant 0 : index
    %c0_2 = arith.constant 0 : index
    %1 = vector.load %arg2[%c0_1, %c0_2] : memref<32x32xf32, #tpu.memory_space<vmem>>, vector<32x32xf32>
    %c0_3 = arith.constant 0 : index
    %c0_4 = arith.constant 0 : index
    %2 = vector.load %arg3[%c0_3, %c0_4] : memref<1x32xf32, #tpu.memory_space<vmem>>, vector<1x32xf32>
    %cst = arith.constant dense<0.000000e+00> : vector<16x32xf32>
    %3 = tpu.matmul %0, %1, %cst {dimension_numbers = #tpu.dot_dimension_numbers<[1], [0], [0], [1], [0, 0, 1, 1], [], []>} : vector<16x32xf32>, vector<32x32xf32>, vector<16x32xf32> -> vector<16x32xf32>
    %4 = vector.broadcast %2 : vector<1x32xf32> to vector<16x32xf32>
    %5 = arith.addf %3, %4 : vector<16x32xf32>
    %cst_5 = arith.constant 0.000000e+00 : f32
    %6 = vector.broadcast %cst_5 : f32 to vector<16x32xf32>
    %7 = arith.maximumf %5, %6 : vector<16x32xf32>
    %c0_6 = arith.constant 0 : index
    %c0_7 = arith.constant 0 : index
    %8 = vector.load %arg4[%c0_6, %c0_7] : memref<32x32xf32, #tpu.memory_space<vmem>>, vector<32x32xf32>
    %c0_8 = arith.constant 0 : index
    %c0_9 = arith.constant 0 : index
    %9 = vector.load %arg5[%c0_8, %c0_9] : memref<1x32xf32, #tpu.memory_space<vmem>>, vector<1x32xf32>
    %cst_10 = arith.constant dense<0.000000e+00> : vector<16x32xf32>
    %10 = tpu.matmul %7, %8, %cst_10 {dimension_numbers = #tpu.dot_dimension_numbers<[1], [0], [0], [1], [0, 0, 1, 1], [], []>} : vector<16x32xf32>, vector<32x32xf32>, vector<16x32xf32> -> vector<16x32xf32>
    %11 = vector.broadcast %9 : vector<1x32xf32> to vector<16x32xf32>
    %12 = arith.addf %10, %11 : vector<16x32xf32>
    %cst_11 = arith.constant 0.000000e+00 : f32
    %13 = vector.broadcast %cst_11 : f32 to vector<16x32xf32>
    %14 = arith.maximumf %12, %13 : vector<16x32xf32>
    %c0_12 = arith.constant 0 : index
    %c0_13 = arith.constant 0 : index
    %15 = vector.load %arg6[%c0_12, %c0_13] : memref<32x128xf32, #tpu.memory_space<vmem>>, vector<32x128xf32>
    %c0_14 = arith.constant 0 : index
    %c0_15 = arith.constant 0 : index
    %16 = vector.load %arg7[%c0_14, %c0_15] : memref<1x128xf32, #tpu.memory_space<vmem>>, vector<1x128xf32>
    %cst_16 = arith.constant dense<0.000000e+00> : vector<16x128xf32>
    %17 = tpu.matmul %14, %15, %cst_16 {dimension_numbers = #tpu.dot_dimension_numbers<[1], [0], [0], [1], [0, 0, 1, 1], [], []>} : vector<16x32xf32>, vector<32x128xf32>, vector<16x128xf32> -> vector<16x128xf32>
    %18 = vector.broadcast %16 : vector<1x128xf32> to vector<16x128xf32>
    %19 = arith.addf %17, %18 : vector<16x128xf32>
    %c0_17 = arith.constant 0 : index
    %c0_18 = arith.constant 0 : index
    %20 = vector.load %arg8[%c0_17, %c0_18] : memref<16x128xf32, #tpu.memory_space<vmem>>, vector<16x128xf32>
    tpu.vector_store %arg8[%c0_17, %c0_18], %19 {strides = array<i32>} : memref<16x128xf32, #tpu.memory_space<vmem>>, vector<16x128xf32>,
    return
  }
  func.func @transform_0(%arg0: i32) -> (i32, i32) {
    %c0_i32 = arith.constant 0 : i32
    %c0_i32_0 = arith.constant 0 : i32
    return %arg0, %c0_i32 : i32, i32
  }
  func.func @transform_1(%arg0: i32) -> (i32, i32) {
    %c0_i32 = arith.constant 0 : i32
    %c0_i32_0 = arith.constant 0 : i32
    %c0_i32_1 = arith.constant 0 : i32
    return %c0_i32, %c0_i32_0 : i32, i32
  }
  func.func @transform_2(%arg0: i32) -> (i32, i32) {
    %c0_i32 = arith.constant 0 : i32
    %c0_i32_0 = arith.constant 0 : i32
    %c0_i32_1 = arith.constant 0 : i32
    return %c0_i32, %c0_i32_0 : i32, i32
  }
  func.func @transform_3(%arg0: i32) -> (i32, i32) {
    %c0_i32 = arith.constant 0 : i32
    %c0_i32_0 = arith.constant 0 : i32
    %c0_i32_1 = arith.constant 0 : i32
    return %c0_i32, %c0_i32_0 : i32, i32
  }
  func.func @transform_4(%arg0: i32) -> (i32, i32) {
    %c0_i32 = arith.constant 0 : i32
    %c0_i32_0 = arith.constant 0 : i32
    %c0_i32_1 = arith.constant 0 : i32
    return %c0_i32, %c0_i32_0 : i32, i32
  }
  func.func @transform_5(%arg0: i32) -> (i32, i32) {
    %c0_i32 = arith.constant 0 : i32
    %c0_i32_0 = arith.constant 0 : i32
    %c0_i32_1 = arith.constant 0 : i32
    return %c0_i32, %c0_i32_0 : i32, i32
  }
  func.func @transform_6(%arg0: i32) -> (i32, i32) {
    %c0_i32 = arith.constant 0 : i32
    %c0_i32_0 = arith.constant 0 : i32
    %c0_i32_1 = arith.constant 0 : i32
    return %c0_i32, %c0_i32_0 : i32, i32
  }
  func.func @transform_7(%arg0: i32) -> (i32, i32) {
    %c0_i32 = arith.constant 0 : i32
    %c0_i32_0 = arith.constant 0 : i32
    return %arg0, %c0_i32 : i32, i32
  }
}

</mosaic_0001>

<llo_original>
// kernel: tpu_custom_call.1
$region0: #{tpu_custom_call.1}
  #allocation0 [shape = 'u32[]', space=smem, size = 0x4, offset = 0x4, fixed_abs, tag = 'smem constant byte address 0x4 - core index']
  #allocation1 [shape = 'u32[144,128]{1,0:T(1,128)}', space=vmem, size = 0x12000, scoped, tag = 'internal scratch']
  %s0 = inlined_call_operand.hbm [shape: f32[16,32], index: 0, kind: input, shape index: {}]
  %s1 = inlined_call_operand.hbm [shape: f32[32,32], index: 1, kind: input, shape index: {}]
  %s2 = inlined_call_operand.vmem [shape: f32[1,32], index: 2, kind: input, shape index: {}]
  %s3 = inlined_call_operand.hbm [shape: f32[32,32], index: 3, kind: input, shape index: {}]
  %s4 = inlined_call_operand.vmem [shape: f32[1,32], index: 4, kind: input, shape index: {}]
  %s5 = inlined_call_operand.hbm [shape: f32[32,128], index: 5, kind: input, shape index: {}]
  %s6 = inlined_call_operand.vmem [shape: f32[1,128], index: 6, kind: input, shape index: {}]
  %s7 = inlined_call_operand.hbm [shape: f32[16,128], index: 7, kind: output, shape index: {}]
  %s8 = sld [smem:[#allocation0]]
  $region54: #{tpu_custom_call.1} parent=0
    _
  %s10 = ssub.s32 1, %s8
  %s11 = scalar_select 0, %s10, %s8
  $region1: #{tpu_custom_call.1} parent=0
    #allocation2 [shape = 'u8[8192]{0}', space=vmem, size = 0x2000, scoped, tag = 'input window, operand 0, single buffered']
    #allocation3 [shape = 's32[1]{0}', space=sflag, size = 0x4, scoped, tag = 'scoped memory for tpu_custom_call.1']
    #allocation4 [shape = 's32[1]{0}', space=sflag, size = 0x4, scoped, tag = 'scoped memory for tpu_custom_call.1']
    #allocation5 [shape = 'u8[16384]{0}', space=vmem, size = 0x4000, scoped, tag = 'input window, operand 1, single buffered']
    #allocation6 [shape = 's32[1]{0}', space=sflag, size = 0x4, scoped, tag = 'scoped memory for tpu_custom_call.1']
    #allocation7 [shape = 'u8[16384]{0}', space=vmem, size = 0x4000, scoped, tag = 'input window, operand 3, single buffered']
    #allocation8 [shape = 'u8[16384]{0}', space=vmem, size = 0x4000, scoped, tag = 'input window, operand 5, single buffered']
    #allocation9 [shape = 's32[1]{0}', space=sflag, size = 0x4, scoped, tag = 'scoped memory for tpu_custom_call.1']
    #allocation10 [shape = 'u8[8192]{0}', space=vmem, size = 0x2000, scoped, tag = 'output window, operand 0, single buffered']
    %12 = vsyncpa [#allocation3], 0
    %13 = vsyncpa [#allocation6], 0
    %14 = vsyncpa [#allocation9], 0
    %15 = vsyncpa [#allocation4], 0
    // Predicated region
    $region2: #{tpu_custom_call.1} parent=1 // pred_check
      _
    $region3: #{tpu_custom_call.1} parent=1 // pred_check_branch
      %17 = sbr.rel (0) target = $region5
    $region4: #{tpu_custom_call.1} parent=1 // pred_region
      %s19 = ssub.s32 256, 256
      %20 = vsyncadd [#allocation3], %s19
      %s21 = sshll.u32 [#allocation2], 4
      %s22 = int_to_ptr.vmem [resolvable:$true] %s21
      %27 = dma.hbm_to_vmem [thread:$0]  %s0, 256, %s22, [#allocation3], 128, 128, 8
    $region5: #{tpu_custom_call.1} parent=1 // pred_fallthru
      _
    // Predicated region
    $region6: #{tpu_custom_call.1} parent=1 // pred_check
      _
    $region7: #{tpu_custom_call.1} parent=1 // pred_check_branch
      %29 = sbr.rel (0) target = $region9
    $region8: #{tpu_custom_call.1} parent=1 // pred_region
      %s31 = ssub.s32 512, 512
      %32 = vsyncadd [#allocation6], %s31
      %s33 = sshll.u32 [#allocation5], 4
      %s34 = int_to_ptr.vmem [resolvable:$true] %s33
      %39 = dma.hbm_to_vmem [thread:$0]  %s1, 512, %s34, [#allocation6], 128, 128, 8
    $region9: #{tpu_custom_call.1} parent=1 // pred_fallthru
      _
    // Predicated region
    $region10: #{tpu_custom_call.1} parent=1 // pred_check
      _
    $region11: #{tpu_custom_call.1} parent=1 // pred_check_branch
      %41 = sbr.rel (0) target = $region13
    $region12: #{tpu_custom_call.1} parent=1 // pred_region
      _
    $region13: #{tpu_custom_call.1} parent=1 // pred_fallthru
      _
    // Predicated region
    $region14: #{tpu_custom_call.1} parent=1 // pred_check
      _
    $region15: #{tpu_custom_call.1} parent=1 // pred_check_branch
      %43 = sbr.rel (0) target = $region17
    $region16: #{tpu_custom_call.1} parent=1 // pred_region
      %s45 = ssub.s32 512, 512
      %46 = vsyncadd [#allocation6], %s45
      %s47 = sshll.u32 [#allocation7], 4
      %s48 = int_to_ptr.vmem [resolvable:$true] %s47
      %53 = dma.hbm_to_vmem [thread:$0]  %s3, 512, %s48, [#allocation6], 128, 128, 8
    $region17: #{tpu_custom_call.1} parent=1 // pred_fallthru
      _
    // Predicated region
    $region18: #{tpu_custom_call.1} parent=1 // pred_check
      _
    $region19: #{tpu_custom_call.1} parent=1 // pred_check_branch
      %55 = sbr.rel (0) target = $region21
    $region20: #{tpu_custom_call.1} parent=1 // pred_region
      _
    $region21: #{tpu_custom_call.1} parent=1 // pred_fallthru
      _
    // Predicated region
    $region22: #{tpu_custom_call.1} parent=1 // pred_check
      _
    $region23: #{tpu_custom_call.1} parent=1 // pred_check_branch
      %57 = sbr.rel (0) target = $region25
    $region24: #{tpu_custom_call.1} parent=1 // pred_region
      %s59 = ssub.s32 512, 512
      %60 = vsyncadd [#allocation9], %s59
      %s61 = sshll.u32 [#allocation8], 4
      %s62 = int_to_ptr.vmem [resolvable:$true] %s61
      %67 = dma.hbm_to_vmem [thread:$0]  %s5, 512, %s62, [#allocation9], 128, 128, 8
    $region25: #{tpu_custom_call.1} parent=1 // pred_fallthru
      _
    // Predicated region
    $region26: #{tpu_custom_call.1} parent=1 // pred_check
      _
    $region27: #{tpu_custom_call.1} parent=1 // pred_check_branch
      %69 = sbr.rel (0) target = $region29
    $region28: #{tpu_custom_call.1} parent=1 // pred_region
      _
    $region29: #{tpu_custom_call.1} parent=1 // pred_fallthru
      _
    // Predicated region
    $region30: #{tpu_custom_call.1} parent=1 // pred_check
      _
    $region31: #{tpu_custom_call.1} parent=1 // pred_check_branch
      %71 = sbr.rel (0) target = $region33
    $region32: #{tpu_custom_call.1} parent=1 // pred_region
      %72 = dma.done [#allocation3], 256
    $region33: #{tpu_custom_call.1} parent=1 // pred_fallthru
      _
    // Predicated region
    $region34: #{tpu_custom_call.1} parent=1 // pred_check
      _
    $region35: #{tpu_custom_call.1} parent=1 // pred_check_branch
      %74 = sbr.rel (0) target = $region37
    $region36: #{tpu_custom_call.1} parent=1 // pred_region
      %75 = dma.done [#allocation6], 512
    $region37: #{tpu_custom_call.1} parent=1 // pred_fallthru
      _
    // Predicated region
    $region38: #{tpu_custom_call.1} parent=1 // pred_check
      _
    $region39: #{tpu_custom_call.1} parent=1 // pred_check_branch
      %77 = sbr.rel (0) target = $region41
    $region40: #{tpu_custom_call.1} parent=1 // pred_region
      %78 = dma.done [#allocation6], 512
    $region41: #{tpu_custom_call.1} parent=1 // pred_fallthru
      _
    // Predicated region
    $region42: #{tpu_custom_call.1} parent=1 // pred_check
      _
    $region43: #{tpu_custom_call.1} parent=1 // pred_check_branch
      %80 = sbr.rel (0) target = $region45
    $region44: #{tpu_custom_call.1} parent=1 // pred_region
      %81 = dma.done [#allocation9], 512
    $region45: #{tpu_custom_call.1} parent=1 // pred_fallthru
      _
    %v82 = vld [vmem:[#allocation2] sm:$0xff]
    %v83 = vld [vmem:[#allocation2 + $0x8] sm:$0xff]
    %v84 = vld [vmem:[#allocation5] sm:$0xff]
    %v85 = vld [vmem:[#allocation5 + $0x8] sm:$0xff]
    %v86 = vld [vmem:[#allocation5 + $0x10] sm:$0xff]
    %v87 = vld [vmem:[#allocation5 + $0x18] sm:$0xff]
    %v88 = vld [vmem:[%s2] sm:$0x1]
    %v90 = vlaneseq
    %v91 = vshrl.u32 %v90, 7
    %v92 = vsub.s32 0, %v91
    %v93 = vrot.slane %v88, %v92
    %vm95 = vcmask 261120
    %v97 = vsel %vm95, %v82, 0
    %v100 = vsel %vm95, %v83, 0
    %102 = vmatprep.subr.mxu0 0.0
    %103 = vmatpush1.msra.mxu0 %v84
    %104 = vmatprep.subr.mxu0 0.0
    %105 = vmatpush1.msra.mxu0 %v85
    %106 = vmatprep.subr.mxu0 0.0
    %107 = vmatpush1.msra.mxu0 %v86
    %108 = vmatprep.subr.mxu0 0.0
    %109 = vmatpush1.msra.mxu0 %v87
    %110 = vmatprep.subr.mxu0 0.0
    %111 = vmatpush1.msra.mxu0 0.0
    %112 = vmatprep.subr.mxu0 0.0
    %113 = vmatpush1.msra.mxu0 0.0
    %114 = vmatprep.subr.mxu0 0.0
    %115 = vmatpush1.msra.mxu0 0.0
    %116 = vmatprep.subr.mxu0 0.0
    %117 = vmatpush1.msra.mxu0 0.0
    %118 = vmatprep.subr.mxu0 0.0
    %119 = vmatpush1.msra.mxu0 0.0
    %120 = vmatprep.subr.mxu0 0.0
    %121 = vmatpush1.msra.mxu0 0.0
    %122 = vmatprep.subr.mxu0 0.0
    %123 = vmatpush1.msra.mxu0 0.0
    %124 = vmatprep.subr.mxu0 0.0
    %125 = vmatpush1.msra.mxu0 0.0
    %126 = vmatprep.subr.mxu0 0.0
    %127 = vmatpush1.msra.mxu0 0.0
    %128 = vmatprep.subr.mxu0 0.0
    %129 = vmatpush1.msra.mxu0 0.0
    %130 = vmatprep.subr.mxu0 0.0
    %131 = vmatpush1.msra.mxu0 0.0
    %132 = vmatprep.subr.mxu0 0.0
    %133 = vmatpush1.msra.mxu0 0.0
    %134 = vmatprep.subr.mxu0 0.0
    %135 = vmatpush1.msra.mxu0 0.0
    %136 = vmatprep.subr.mxu0 0.0
    %137 = vmatpush1.msra.mxu0 0.0
    %138 = vmatprep.subr.mxu0 0.0
    %139 = vmatpush1.msra.mxu0 0.0
    %140 = vmatprep.subr.mxu0 0.0
    %141 = vmatpush1.msra.mxu0 0.0
    %142 = vmatprep.subr.mxu0 0.0
    %143 = vmatpush1.msra.mxu0 0.0
    %144 = vmatprep.subr.mxu0 0.0
    %145 = vmatpush1.msra.mxu0 0.0
    %146 = vmatprep.subr.mxu0 0.0
    %147 = vmatpush1.msra.mxu0 0.0
    %148 = vmatprep.subr.mxu0 0.0
    %149 = vmatpush1.msra.mxu0 0.0
    %150 = vmatprep.subr.mxu0 0.0
    %151 = vmatpush1.msra.mxu0 0.0
    %152 = vmatprep.subr.mxu0 0.0
    %153 = vmatpush1.msra.mxu0 0.0
    %154 = vmatprep.subr.mxu0 0.0
    %155 = vmatpush1.msra.mxu0 0.0
    %156 = vmatprep.subr.mxu0 0.0
    %157 = vmatpush1.msra.mxu0 0.0
    %158 = vmatprep.subr.mxu0 0.0
    %159 = vmatpush1.msra.mxu0 0.0
    %160 = vmatprep.subr.mxu0 0.0
    %161 = vmatpush1.msra.mxu0 0.0
    %162 = vmatprep.subr.mxu0 0.0
    %163 = vmatpush1.msra.mxu0 0.0
    %164 = vmatprep.subr.mxu0 0.0
    %165 = vmatpush1.msra.mxu0 0.0
    %166 = vmatprep.mubr.f32.mxu0 0.0
    %167 = vmatmul.mubr.f32.gmra.mrb[0].mxu0 %v97
    %v168 = vpop.f32.mrb[0].mxu0
    %v169 = vadd.f32 %v93, %v168
    %v170 = vpop.f32.mrb[0].mxu0
    %171 = vmatprep.mubr.f32.mxu0 0.0
    %172 = vmatmul.mubr.f32.gmra.mrb[0].mxu0 %v100
    %v173 = vpop.f32.mrb[0].mxu0
    %v174 = vadd.f32 %v93, %v173
    %v175 = vpop.f32.mrb[0].mxu0
    %176 = vdwg.mxu0
    %v177 = vmax.f32 %v169, 0.0
    %v178 = vmax.f32 %v174, 0.0
    %v179 = vld [vmem:[#allocation7] sm:$0xff]
    %v180 = vld [vmem:[#allocation7 + $0x8] sm:$0xff]
    %v181 = vld [vmem:[#allocation7 + $0x10] sm:$0xff]
    %v182 = vld [vmem:[#allocation7 + $0x18] sm:$0xff]
    %v183 = vld [vmem:[%s4] sm:$0x1]
    %v185 = vlaneseq
    %v186 = vshrl.u32 %v185, 7
    %v187 = vsub.s32 0, %v186
    %v188 = vrot.slane %v183, %v187
    %v191 = vsel %vm95, %v177, 0
    %v194 = vsel %vm95, %v178, 0
    %196 = vmatprep.subr.mxu0 0.0
    %197 = vmatpush1.msra.mxu0 %v179
    %198 = vmatprep.subr.mxu0 0.0
    %199 = vmatpush1.msra.mxu0 %v180
    %200 = vmatprep.subr.mxu0 0.0
    %201 = vmatpush1.msra.mxu0 %v181
    %202 = vmatprep.subr.mxu0 0.0
    %203 = vmatpush1.msra.mxu0 %v182
    %204 = vmatprep.subr.mxu0 0.0
    %205 = vmatpush1.msra.mxu0 0.0
    %206 = vmatprep.subr.mxu0 0.0
    %207 = vmatpush1.msra.mxu0 0.0
    %208 = vmatprep.subr.mxu0 0.0
    %209 = vmatpush1.msra.mxu0 0.0
    %210 = vmatprep.subr.mxu0 0.0
    %211 = vmatpush1.msra.mxu0 0.0
    %212 = vmatprep.subr.mxu0 0.0
    %213 = vmatpush1.msra.mxu0 0.0
    %214 = vmatprep.subr.mxu0 0.0
    %215 = vmatpush1.msra.mxu0 0.0
    %216 = vmatprep.subr.mxu0 0.0
    %217 = vmatpush1.msra.mxu0 0.0
    %218 = vmatprep.subr.mxu0 0.0
    %219 = vmatpush1.msra.mxu0 0.0
    %220 = vmatprep.subr.mxu0 0.0
    %221 = vmatpush1.msra.mxu0 0.0
    %222 = vmatprep.subr.mxu0 0.0
    %223 = vmatpush1.msra.mxu0 0.0
    %224 = vmatprep.subr.mxu0 0.0
    %225 = vmatpush1.msra.mxu0 0.0
    %226 = vmatprep.subr.mxu0 0.0
    %227 = vmatpush1.msra.mxu0 0.0
    %228 = vmatprep.subr.mxu0 0.0
    %229 = vmatpush1.msra.mxu0 0.0
    %230 = vmatprep.subr.mxu0 0.0
    %231 = vmatpush1.msra.mxu0 0.0
    %232 = vmatprep.subr.mxu0 0.0
    %233 = vmatpush1.msra.mxu0 0.0
    %234 = vmatprep.subr.mxu0 0.0
    %235 = vmatpush1.msra.mxu0 0.0
    %236 = vmatprep.subr.mxu0 0.0
    %237 = vmatpush1.msra.mxu0 0.0
    %238 = vmatprep.subr.mxu0 0.0
    %239 = vmatpush1.msra.mxu0 0.0
    %240 = vmatprep.subr.mxu0 0.0
    %241 = vmatpush1.msra.mxu0 0.0
    %242 = vmatprep.subr.mxu0 0.0
    %243 = vmatpush1.msra.mxu0 0.0
    %244 = vmatprep.subr.mxu0 0.0
    %245 = vmatpush1.msra.mxu0 0.0
    %246 = vmatprep.subr.mxu0 0.0
    %247 = vmatpush1.msra.mxu0 0.0
    %248 = vmatprep.subr.mxu0 0.0
    %249 = vmatpush1.msra.mxu0 0.0
    %250 = vmatprep.subr.mxu0 0.0
    %251 = vmatpush1.msra.mxu0 0.0
    %252 = vmatprep.subr.mxu0 0.0
    %253 = vmatpush1.msra.mxu0 0.0
    %254 = vmatprep.subr.mxu0 0.0
    %255 = vmatpush1.msra.mxu0 0.0
    %256 = vmatprep.subr.mxu0 0.0
    %257 = vmatpush1.msra.mxu0 0.0
    %258 = vmatprep.subr.mxu0 0.0
    %259 = vmatpush1.msra.mxu0 0.0
    %260 = vmatprep.mubr.f32.mxu0 0.0
    %261 = vmatmul.mubr.f32.gmra.mrb[0].mxu0 %v191
    %v262 = vpop.f32.mrb[0].mxu0
    %v263 = vadd.f32 %v188, %v262
    %v264 = vpop.f32.mrb[0].mxu0
    %265 = vmatprep.mubr.f32.mxu0 0.0
    %266 = vmatmul.mubr.f32.gmra.mrb[0].mxu0 %v194
    %v267 = vpop.f32.mrb[0].mxu0
    %v268 = vadd.f32 %v188, %v267
    %v269 = vpop.f32.mrb[0].mxu0
    %270 = vdwg.mxu0
    %v271 = vmax.f32 %v263, 0.0
    %v272 = vmax.f32 %v268, 0.0
    %v273 = vld [vmem:[#allocation8] sm:$0xff]
    %v274 = vld [vmem:[#allocation8 + $0x8] sm:$0xff]
    %v275 = vld [vmem:[#allocation8 + $0x10] sm:$0xff]
    %v276 = vld [vmem:[#allocation8 + $0x18] sm:$0xff]
    %v277 = vld [vmem:[%s6] sm:$0x1]
    %v279 = vlaneseq
    %v280 = vshrl.u32 %v279, 7
    %v281 = vsub.s32 0, %v280
    %v282 = vrot.slane %v277, %v281
    %v285 = vsel %vm95, %v271, 0
    %v288 = vsel %vm95, %v272, 0
    %290 = vmatprep.subr.mxu0 0.0
    %291 = vmatpush1.msra.mxu0 %v273
    %292 = vmatprep.subr.mxu0 0.0
    %293 = vmatpush1.msra.mxu0 %v274
    %294 = vmatprep.subr.mxu0 0.0
    %295 = vmatpush1.msra.mxu0 %v275
    %296 = vmatprep.subr.mxu0 0.0
    %297 = vmatpush1.msra.mxu0 %v276
    %298 = vmatprep.subr.mxu0 0.0
    %299 = vmatpush1.msra.mxu0 0.0
    %300 = vmatprep.subr.mxu0 0.0
    %301 = vmatpush1.msra.mxu0 0.0
    %302 = vmatprep.subr.mxu0 0.0
    %303 = vmatpush1.msra.mxu0 0.0
    %304 = vmatprep.subr.mxu0 0.0
    %305 = vmatpush1.msra.mxu0 0.0
    %306 = vmatprep.subr.mxu0 0.0
    %307 = vmatpush1.msra.mxu0 0.0
    %308 = vmatprep.subr.mxu0 0.0
    %309 = vmatpush1.msra.mxu0 0.0
    %310 = vmatprep.subr.mxu0 0.0
    %311 = vmatpush1.msra.mxu0 0.0
    %312 = vmatprep.subr.mxu0 0.0
    %313 = vmatpush1.msra.mxu0 0.0
    %314 = vmatprep.subr.mxu0 0.0
    %315 = vmatpush1.msra.mxu0 0.0
    %316 = vmatprep.subr.mxu0 0.0
    %317 = vmatpush1.msra.mxu0 0.0
    %318 = vmatprep.subr.mxu0 0.0
    %319 = vmatpush1.msra.mxu0 0.0
    %320 = vmatprep.subr.mxu0 0.0
    %321 = vmatpush1.msra.mxu0 0.0
    %322 = vmatprep.subr.mxu0 0.0
    %323 = vmatpush1.msra.mxu0 0.0
    %324 = vmatprep.subr.mxu0 0.0
    %325 = vmatpush1.msra.mxu0 0.0
    %326 = vmatprep.subr.mxu0 0.0
    %327 = vmatpush1.msra.mxu0 0.0
    %328 = vmatprep.subr.mxu0 0.0
    %329 = vmatpush1.msra.mxu0 0.0
    %330 = vmatprep.subr.mxu0 0.0
    %331 = vmatpush1.msra.mxu0 0.0
    %332 = vmatprep.subr.mxu0 0.0
    %333 = vmatpush1.msra.mxu0 0.0
    %334 = vmatprep.subr.mxu0 0.0
    %335 = vmatpush1.msra.mxu0 0.0
    %336 = vmatprep.subr.mxu0 0.0
    %337 = vmatpush1.msra.mxu0 0.0
    %338 = vmatprep.subr.mxu0 0.0
    %339 = vmatpush1.msra.mxu0 0.0
    %340 = vmatprep.subr.mxu0 0.0
    %341 = vmatpush1.msra.mxu0 0.0
    %342 = vmatprep.subr.mxu0 0.0
    %343 = vmatpush1.msra.mxu0 0.0
    %344 = vmatprep.subr.mxu0 0.0
    %345 = vmatpush1.msra.mxu0 0.0
    %346 = vmatprep.subr.mxu0 0.0
    %347 = vmatpush1.msra.mxu0 0.0
    %348 = vmatprep.subr.mxu0 0.0
    %349 = vmatpush1.msra.mxu0 0.0
    %350 = vmatprep.subr.mxu0 0.0
    %351 = vmatpush1.msra.mxu0 0.0
    %352 = vmatprep.subr.mxu0 0.0
    %353 = vmatpush1.msra.mxu0 0.0
    %354 = vmatprep.mubr.f32.mxu0 0.0
    %355 = vmatmul.mubr.f32.gmra.mrb[0].mxu0 %v285
    %v356 = vpop.f32.mrb[0].mxu0
    %v357 = vadd.f32 %v282, %v356
    %v358 = vpop.f32.mrb[0].mxu0
    %359 = vmatprep.mubr.f32.mxu0 0.0
    %360 = vmatmul.mubr.f32.gmra.mrb[0].mxu0 %v288
    %v361 = vpop.f32.mrb[0].mxu0
    %v362 = vadd.f32 %v282, %v361
    %v363 = vpop.f32.mrb[0].mxu0
    %364 = vdwg.mxu0
    %365 = vst [vmem:[#allocation10] sm:$0xff] %v357
    %366 = vst [vmem:[#allocation10 + $0x8] sm:$0xff] %v362
    // Predicated region
    $region46: #{tpu_custom_call.1} parent=1 // pred_check
      _
    $region47: #{tpu_custom_call.1} parent=1 // pred_check_branch
      %368 = sbr.rel (0) target = $region49
    $region48: #{tpu_custom_call.1} parent=1 // pred_region
      %s370 = ssub.s32 256, 256
      %371 = vsyncadd [#allocation4], %s370
      %s372 = sshll.u32 [#allocation10], 4
      %s373 = int_to_ptr.vmem [resolvable:$true] %s372
      %378 = dma.vmem_to_hbm [thread:$0]  %s373, 256, %s7, [#allocation4], 128, 128, 8
    $region49: #{tpu_custom_call.1} parent=1 // pred_fallthru
      _
    // Predicated region
    $region50: #{tpu_custom_call.1} parent=1 // pred_check
      _
    $region51: #{tpu_custom_call.1} parent=1 // pred_check_branch
      %380 = sbr.rel (0) target = $region53
    $region52: #{tpu_custom_call.1} parent=1 // pred_region
      %381 = dma.done [#allocation4], 256
    $region53: #{tpu_custom_call.1} parent=1 // pred_fallthru
      _
    %382 = vsyncpa [#allocation3], 1
    %383 = vsyncpa [#allocation6], 1
    %384 = vsyncpa [#allocation9], 1
    %385 = vsyncpa [#allocation4], 1

</llo_original>
